<compile_context>
chip_gen: v5e
topology: v5e:2x2
jax: 0.10.0
libtpu: 0.0.40
codegen_flags: <defaults>
</compile_context>

<pallas_src>
import functools

import jax
import jax.numpy as jnp
import numpy as np
from jax import lax
from jax.experimental import pallas as pl
from jax.experimental.pallas import tpu as pltpu


def _addstcn_kernel(x_ref, p_ref, o_ref, *, num_levels, kernel_size, dilation_c,
                    compute_dtype):
    K = kernel_size
    TB, C, L = x_ref.shape

    pk = p_ref[...]                                            # (C, P) f32, tiny

    # --- softmax(fs_attention, dim=0), fs_attention is (C, 1) --------------
    att = pk[:, 0:1]
    att = att - jnp.max(att, axis=0, keepdims=True)
    e = jnp.exp(att)
    sm = e / jnp.sum(e, axis=0, keepdims=True)                 # (C, 1) f32

    # --- unpack the packed parameter columns (all hoisted, loaded once) ----
    c0 = 1
    cw = pk[:, c0:c0 + num_levels * K].astype(compute_dtype); c0 += num_levels * K
    cb = pk[:, c0:c0 + num_levels].astype(compute_dtype);     c0 += num_levels
    pr = pk[:, c0:c0 + num_levels - 1].astype(compute_dtype); c0 += num_levels - 1
    wc = pk[:, c0:c0 + 1];                                     c0 += 1   # f32 (final acc)
    bc = pk[0:1, c0:c0 + 1]                                    # (1, 1) f32 (replicated rows)

    # --- hoisted causal masks (trace-time-constant shift distances) --------
    lane = lax.broadcasted_iota(jnp.int32, (1, 1, L), 2)
    shift_set = sorted({(K - 1 - k) * (dilation_c ** l)
                        for l in range(num_levels) for k in range(K - 1)})
    masks = {d: lane >= d for d in shift_set}                  # each (1, 1, L) bool

    # --- batch-vectorized depthwise TCN over the whole (TB, C, L) block ----
    cur = x_ref[...].astype(compute_dtype) * sm.astype(compute_dtype)[None, :, :]
    zero = jnp.zeros((), compute_dtype)
    for l in range(num_levels):
        dil = dilation_c ** l
        # tap k = K-1 has zero shift
        conv = cw[None, :, l * K + K - 1:l * K + K] * cur
        shifted = cur
        for k in range(K - 2, -1, -1):
            d = (K - 1 - k) * dil                              # cumulative causal shift
            # NOTE: pltpu.roll wraps; when d >= L correctness relies entirely on
            # masks[d] being all-False (it zeroes every lane). Keep roll+mask paired.
            shifted = pltpu.roll(shifted, dil % L, 2)
            shifted = jnp.where(masks[d], shifted, zero)
            conv = conv + cw[None, :, l * K + k:l * K + k + 1] * shifted
        conv = conv + cb[None, :, l:l + 1]                     # depthwise conv bias

        if l < num_levels - 1:
            pre = conv if l == 0 else conv + cur               # FirstBlock: no residual
            a = pr[None, :, l:l + 1]                           # PReLU slope per channel
            cur = jnp.where(pre > 0, pre, a * pre)
        else:
            z = (conv + cur).astype(jnp.float32)               # LastBlock residual, f32 acc
            # fused (pointwise Conv1d) ∘ (LastBlock Linear): channel-weighted sum
            y = jnp.sum(wc[None, :, :] * z, axis=1) + bc       # (TB, L) f32
            o_ref[...] = y.astype(o_ref.dtype)                 # one dense (TB, L) store


def _vmem_capacity_bytes():
    try:
        return int(pltpu.get_tpu_info().vmem_capacity_bytes)
    except Exception:
        return 64 * 1024 * 1024      # conservative default (v7x per-TensorCore)


def _pick_batch_tile(N, C, L, itemsize):
    """Pick TB (batch rows per block).

    Constraints: TB divides N and the (TB, L) output block is sublane-legal
    (TB % 8 == 0 or TB == N).  Preference order: even number of grid steps >= 2
    (v7x: two TensorCores share the "parallel" batch axis), then >= 2 steps,
    then the largest tile under a generation-aware VMEM budget.
    """
    vmem_cap = _vmem_capacity_bytes()
    budget = min(8 << 20, vmem_cap // 16)        # ~4 MiB on v7x, ~8 MiB on v5e/v6e
    legal = [tb for tb in range(1, N + 1)
             if N % tb == 0 and (tb % 8 == 0 or tb == N)]
    fitting = [tb for tb in legal if tb * C * L * itemsize <= budget]
    if not fitting:
        return min(legal)

    def score(tb):
        steps = N // tb
        return (steps >= 2 and steps % 2 == 0, steps >= 2, tb)

    return max(fitting, key=score)


def addstcn_forward(x, params, *, num_levels, kernel_size, dilation_c,
                    block_batch=None, compute_dtype=jnp.float32):
    """x: (N, C, L). Returns (N, L, 1) float32, matching the PyTorch module."""
    assert num_levels >= 2, "this packing assumes FirstBlock + ... + LastBlock"
    N, C, L = x.shape
    K = kernel_size

    TB = (_pick_batch_tile(N, C, L, x.dtype.itemsize)
          if block_batch is None else block_batch)
    assert N % TB == 0 and (TB % 8 == 0 or TB == N), \
        "TB must divide N and keep the (TB, L) output block sublane-legal"

    # repack all (tiny) parameters into one (C, P) f32 array, channels on sublanes
    cw = jnp.transpose(params["conv_w"], (1, 0, 2)).reshape(C, num_levels * K)
    cb = params["conv_b"].T                                    # (C, num_levels)
    pr = params["prelu_w"].T                                   # (C, num_levels - 1)
    # fold pointwise Conv1d(C, 1, 1) into the LastBlock Linear (exact algebra)
    wc = (params["pw_w"] @ params["lin_w"]).reshape(C, 1)      # (C, 1)
    bc_val = (params["pw_w"] @ params["lin_b"] + params["pw_b"]).reshape(())
    pk = jnp.concatenate([
        params["fs_attention"].astype(jnp.float32),
        cw.astype(jnp.float32), cb.astype(jnp.float32), pr.astype(jnp.float32),
        wc.astype(jnp.float32), jnp.full((C, 1), bc_val, jnp.float32)], axis=1)
    P = pk.shape[1]

    block_bytes = TB * C * L * x.dtype.itemsize
    vmem_cap = _vmem_capacity_bytes()
    # ~2x double-buffered x block + out block + a handful of block-sized temporaries
    vmem_limit = int(min(vmem_cap * 3 // 4, max(32 << 20, 12 * block_bytes)))

    kernel = functools.partial(_addstcn_kernel, num_levels=num_levels,
                               kernel_size=K, dilation_c=dilation_c,
                               compute_dtype=compute_dtype)

    out = pl.pallas_call(
        kernel,
        out_shape=jax.ShapeDtypeStruct((N, L), jnp.float32),
        grid=(N // TB,),
        in_specs=[
            # x block spans the full (C, L) trailing dims -> always tile-legal,
            # no wrapper-side time padding (no extra HBM pass).
            pl.BlockSpec((TB, C, L), lambda b: (b, 0, 0)),
            pl.BlockSpec((C, P), lambda b: (0, 0)),            # packed params (const)
        ],
        out_specs=pl.BlockSpec((TB, L), lambda b: (b, 0)),      # dense 2-D output block
        compiler_params=pltpu.CompilerParams(
            dimension_semantics=("parallel",),
            vmem_limit_bytes=vmem_limit),
    )(x, pk)

    return out[..., None]                                       # (N, L, 1)


def reference_forward(x, params, *, num_levels, kernel_size, dilation_c):
    """Pure-JAX reference matching the PyTorch forward semantics."""
    K = kernel_size
    N, C, L = x.shape
    att = jax.nn.softmax(params["fs_attention"], axis=0)       # (C, 1)
    cur = x * att[None, :, :]
    for l in range(num_levels):
        d = dilation_c ** l
        w = params["conv_w"][l]                                # (C, K)
        b = params["conv_b"][l]                                # (C,)
        pad = (K - 1) * d
        xp = jnp.pad(cur, ((0, 0), (0, 0), (pad, 0)))
        out = jnp.zeros_like(cur)
        for k in range(K):
            out = out + w[:, k][None, :, None] * xp[:, :, k * d:k * d + L]
        out = out + b[None, :, None]
        if l < num_levels - 1:
            pre = out if l == 0 else out + cur
            a = params["prelu_w"][l]
            cur = jnp.where(pre > 0, pre, a[None, :, None] * pre)
        else:
            z = out + cur
            cur = (jnp.einsum("oc,ncl->nol", params["lin_w"], z)
                   + params["lin_b"][None, :, None])
    y = jnp.einsum("c,ncl->nl", params["pw_w"], cur) + params["pw_b"]
    return y[:, :, None]


if __name__ == "__main__":
    num_levels, kernel_size, dilation_c = 3, 2, 2

    def make_inputs(key, N, C, L):
        kx, k0, k1, k2, k3, k4, k5 = jax.random.split(key, 7)
        x = jax.random.normal(kx, (N, C, L), dtype=jnp.float32)
        params = {
            # module __init__: fs_attention = ones(input_size, 1)
            "fs_attention": jnp.ones((C, 1), jnp.float32),
            "conv_w": 0.1 * jax.random.normal(k0, (num_levels, C, kernel_size), jnp.float32),
            "conv_b": 0.1 * jax.random.normal(k1, (num_levels, C), jnp.float32),
            "prelu_w": jnp.full((num_levels - 1, C), 0.25, jnp.float32),
            "lin_w": 0.3 * jax.random.normal(k2, (C, C), jnp.float32),
            "lin_b": 0.1 * jax.random.normal(k3, (C,), jnp.float32),
            "pw_w": 0.3 * jax.random.normal(k4, (C,), jnp.float32),
            "pw_b": 0.1 * jax.random.normal(k5, (1,), jnp.float32),
        }
        return x, params

    key = jax.random.PRNGKey(0)
    k_small, k_big = jax.random.split(key)

    # small shapes implied by the module: x is (batch, input_size, seq_len)
    x, params = make_inputs(k_small, 2, 8, 32)
    out = addstcn_forward(x, params, num_levels=num_levels,
                          kernel_size=kernel_size, dilation_c=dilation_c)
    out = jax.block_until_ready(out)
    ref = reference_forward(x, params, num_levels=num_levels,
                            kernel_size=kernel_size, dilation_c=dilation_c)
    assert out.shape == (2, 32, 1)
    np.testing.assert_allclose(np.asarray(out), np.asarray(ref),
                               rtol=5e-4, atol=5e-4)

    # larger batch: exercises the multi-step parallel grid and dense (TB, L) stores
    xb, paramsb = make_inputs(k_big, 32, 8, 256)
    outb = jax.block_until_ready(
        addstcn_forward(xb, paramsb, num_levels=num_levels,
                        kernel_size=kernel_size, dilation_c=dilation_c))
    refb = reference_forward(xb, paramsb, num_levels=num_levels,
                             kernel_size=kernel_size, dilation_c=dilation_c)
    np.testing.assert_allclose(np.asarray(outb), np.asarray(refb),
                               rtol=5e-4, atol=5e-4)

    # bf16 fast path (v6e/v7x: bf16-native VPU + half the HBM bytes); loose tolerance
    out_bf = jax.block_until_ready(
        addstcn_forward(xb.astype(jnp.bfloat16), paramsb, num_levels=num_levels,
                        kernel_size=kernel_size, dilation_c=dilation_c,
                        compute_dtype=jnp.bfloat16))
    np.testing.assert_allclose(np.asarray(out_bf), np.asarray(refb),
                               rtol=5e-2, atol=5e-2)

    print("KERNEL_OK")
</pallas_src>

<mosaic_0001>
module attributes {stable_mosaic.version = 11 : i64} {
  func.func @_addstcn_kernel(%arg0: i32, %arg1: memref<2x8x32xf32, #tpu.memory_space<vmem>>, %arg2: memref<8x14xf32, #tpu.memory_space<vmem>>, %arg3: memref<2x32xf32, #tpu.memory_space<vmem>>) attributes {dimension_semantics = [#tpu.dimension_semantics<parallel>], iteration_bounds = array<i64: 1>, scalar_prefetch = 0 : i64, scratch_operands = 0 : i64, tpu.core_type = #tpu.core_type<tc>, window_params = [{transform_indices = @transform_0, window_bounds = array<i64: 2, 8, 32>}, {pipeline_mode = #tpu.pipeline_mode<synchronous>, transform_indices = @transform_1, window_bounds = array<i64: 8, 14>}, {transform_indices = @transform_2, window_bounds = array<i64: 2, 32>}]} {
    %c0 = arith.constant 0 : index
    %c0_0 = arith.constant 0 : index
    %0 = vector.load %arg2[%c0, %c0_0] : memref<8x14xf32, #tpu.memory_space<vmem>>, vector<8x14xf32>
    %1 = vector.extract_strided_slice %0 {offsets = [0, 0], sizes = [8, 1], strides = [1, 1]} : vector<8x14xf32> to vector<8x1xf32>
    %cst = arith.constant dense<0xFF800000> : vector<1xf32>
    %2 = vector.multi_reduction <maximumf>, %1, %cst [0] : vector<8x1xf32> to vector<1xf32>
    %3 = vector.shape_cast %2 : vector<1xf32> to vector<1x1xf32>
    %4 = vector.broadcast %3 : vector<1x1xf32> to vector<8x1xf32>
    %5 = arith.subf %1, %4 : vector<8x1xf32>
    %6 = math.exp %5 : vector<8x1xf32>
    %cst_1 = arith.constant dense<0.000000e+00> : vector<1xf32>
    %7 = vector.multi_reduction <add>, %6, %cst_1 [0] : vector<8x1xf32> to vector<1xf32>
    %8 = vector.shape_cast %7 : vector<1xf32> to vector<1x1xf32>
    %9 = vector.broadcast %8 : vector<1x1xf32> to vector<8x1xf32>
    %10 = arith.divf %6, %9 : vector<8x1xf32>
    %11 = vector.extract_strided_slice %0 {offsets = [0, 1], sizes = [8, 6], strides = [1, 1]} : vector<8x14xf32> to vector<8x6xf32>
    %12 = vector.extract_strided_slice %0 {offsets = [0, 7], sizes = [8, 3], strides = [1, 1]} : vector<8x14xf32> to vector<8x3xf32>
    %13 = vector.extract_strided_slice %0 {offsets = [0, 10], sizes = [8, 2], strides = [1, 1]} : vector<8x14xf32> to vector<8x2xf32>
    %14 = vector.extract_strided_slice %0 {offsets = [0, 12], sizes = [8, 1], strides = [1, 1]} : vector<8x14xf32> to vector<8x1xf32>
    %15 = vector.extract_strided_slice %0 {offsets = [0, 13], sizes = [1, 1], strides = [1, 1]} : vector<8x14xf32> to vector<1x1xf32>
    %16 = tpu.iota {dimensions = array<i32: 2>} : vector<1x1x32xi32>
    %c1_i32 = arith.constant 1 : i32
    %17 = vector.broadcast %c1_i32 : i32 to vector<1x1x32xi32>
    %18 = arith.cmpi sge, %16, %17 : vector<1x1x32xi32>
    %c2_i32 = arith.constant 2 : i32
    %19 = vector.broadcast %c2_i32 : i32 to vector<1x1x32xi32>
    %20 = arith.cmpi sge, %16, %19 : vector<1x1x32xi32>
    %c4_i32 = arith.constant 4 : i32
    %21 = vector.broadcast %c4_i32 : i32 to vector<1x1x32xi32>
    %22 = arith.cmpi sge, %16, %21 : vector<1x1x32xi32>
    %c0_2 = arith.constant 0 : index
    %c0_3 = arith.constant 0 : index
    %c0_4 = arith.constant 0 : index
    %23 = vector.load %arg1[%c0_2, %c0_3, %c0_4] : memref<2x8x32xf32, #tpu.memory_space<vmem>>, vector<2x8x32xf32>
    %24 = vector.shape_cast %10 : vector<8x1xf32> to vector<1x8x1xf32>
    %25 = vector.broadcast %24 : vector<1x8x1xf32> to vector<2x8x32xf32>
    %26 = arith.mulf %23, %25 : vector<2x8x32xf32>
    %27 = vector.extract_strided_slice %11 {offsets = [0, 1], sizes = [8, 1], strides = [1, 1]} : vector<8x6xf32> to vector<8x1xf32>
    %28 = vector.shape_cast %27 : vector<8x1xf32> to vector<1x8x1xf32>
    %29 = vector.broadcast %28 : vector<1x8x1xf32> to vector<2x8x32xf32>
    %30 = arith.mulf %29, %26 : vector<2x8x32xf32>
    %c1_i32_5 = arith.constant 1 : i32
    %31 = tpu.dynamic_rotate %26 by %c1_i32_5 dim 2 : vector<2x8x32xf32>, i32 -> vector<2x8x32xf32>
    %cst_6 = arith.constant 0.000000e+00 : f32
    %32 = vector.shape_cast %18 : vector<1x1x32xi1> to vector<1x1x32xi1>
    %33 = vector.broadcast %32 : vector<1x1x32xi1> to vector<2x8x32xi1>
    %34 = vector.broadcast %cst_6 : f32 to vector<2x8x32xf32>
    %35 = arith.select %33, %31, %34 : vector<2x8x32xi1>, vector<2x8x32xf32>
    %36 = vector.extract_strided_slice %11 {offsets = [0, 0], sizes = [8, 1], strides = [1, 1]} : vector<8x6xf32> to vector<8x1xf32>
    %37 = vector.shape_cast %36 : vector<8x1xf32> to vector<1x8x1xf32>
    %38 = vector.broadcast %37 : vector<1x8x1xf32> to vector<2x8x32xf32>
    %39 = arith.mulf %38, %35 : vector<2x8x32xf32>
    %40 = arith.addf %30, %39 : vector<2x8x32xf32>
    %41 = vector.extract_strided_slice %12 {offsets = [0, 0], sizes = [8, 1], strides = [1, 1]} : vector<8x3xf32> to vector<8x1xf32>
    %42 = vector.shape_cast %41 : vector<8x1xf32> to vector<1x8x1xf32>
    %43 = vector.broadcast %42 : vector<1x8x1xf32> to vector<2x8x32xf32>
    %44 = arith.addf %40, %43 : vector<2x8x32xf32>
    %45 = vector.extract_strided_slice %13 {offsets = [0, 0], sizes = [8, 1], strides = [1, 1]} : vector<8x2xf32> to vector<8x1xf32>
    %46 = vector.shape_cast %45 : vector<8x1xf32> to vector<1x8x1xf32>
    %cst_7 = arith.constant 0.000000e+00 : f32
    %47 = vector.broadcast %cst_7 : f32 to vector<2x8x32xf32>
    %48 = arith.cmpf ogt, %44, %47 : vector<2x8x32xf32>
    %49 = vector.broadcast %46 : vector<1x8x1xf32> to vector<2x8x32xf32>
    %50 = arith.mulf %49, %44 : vector<2x8x32xf32>
    %51 = arith.select %48, %44, %50 : vector<2x8x32xi1>, vector<2x8x32xf32>
    %52 = vector.extract_strided_slice %11 {offsets = [0, 3], sizes = [8, 1], strides = [1, 1]} : vector<8x6xf32> to vector<8x1xf32>
    %53 = vector.shape_cast %52 : vector<8x1xf32> to vector<1x8x1xf32>
    %54 = vector.broadcast %53 : vector<1x8x1xf32> to vector<2x8x32xf32>
    %55 = arith.mulf %54, %51 : vector<2x8x32xf32>
    %c2_i32_8 = arith.constant 2 : i32
    %56 = tpu.dynamic_rotate %51 by %c2_i32_8 dim 2 : vector<2x8x32xf32>, i32 -> vector<2x8x32xf32>
    %cst_9 = arith.constant 0.000000e+00 : f32
    %57 = vector.shape_cast %20 : vector<1x1x32xi1> to vector<1x1x32xi1>
    %58 = vector.broadcast %57 : vector<1x1x32xi1> to vector<2x8x32xi1>
    %59 = vector.broadcast %cst_9 : f32 to vector<2x8x32xf32>
    %60 = arith.select %58, %56, %59 : vector<2x8x32xi1>, vector<2x8x32xf32>
    %61 = vector.extract_strided_slice %11 {offsets = [0, 2], sizes = [8, 1], strides = [1, 1]} : vector<8x6xf32> to vector<8x1xf32>
    %62 = vector.shape_cast %61 : vector<8x1xf32> to vector<1x8x1xf32>
    %63 = vector.broadcast %62 : vector<1x8x1xf32> to vector<2x8x32xf32>
    %64 = arith.mulf %63, %60 : vector<2x8x32xf32>
    %65 = arith.addf %55, %64 : vector<2x8x32xf32>
    %66 = vector.extract_strided_slice %12 {offsets = [0, 1], sizes = [8, 1], strides = [1, 1]} : vector<8x3xf32> to vector<8x1xf32>
    %67 = vector.shape_cast %66 : vector<8x1xf32> to vector<1x8x1xf32>
    %68 = vector.broadcast %67 : vector<1x8x1xf32> to vector<2x8x32xf32>
    %69 = arith.addf %65, %68 : vector<2x8x32xf32>
    %70 = arith.addf %69, %51 : vector<2x8x32xf32>
    %71 = vector.extract_strided_slice %13 {offsets = [0, 1], sizes = [8, 1], strides = [1, 1]} : vector<8x2xf32> to vector<8x1xf32>
    %72 = vector.shape_cast %71 : vector<8x1xf32> to vector<1x8x1xf32>
    %cst_10 = arith.constant 0.000000e+00 : f32
    %73 = vector.broadcast %cst_10 : f32 to vector<2x8x32xf32>
    %74 = arith.cmpf ogt, %70, %73 : vector<2x8x32xf32>
    %75 = vector.broadcast %72 : vector<1x8x1xf32> to vector<2x8x32xf32>
    %76 = arith.mulf %75, %70 : vector<2x8x32xf32>
    %77 = arith.select %74, %70, %76 : vector<2x8x32xi1>, vector<2x8x32xf32>
    %78 = vector.extract_strided_slice %11 {offsets = [0, 5], sizes = [8, 1], strides = [1, 1]} : vector<8x6xf32> to vector<8x1xf32>
    %79 = vector.shape_cast %78 : vector<8x1xf32> to vector<1x8x1xf32>
    %80 = vector.broadcast %79 : vector<1x8x1xf32> to vector<2x8x32xf32>
    %81 = arith.mulf %80, %77 : vector<2x8x32xf32>
    %c4_i32_11 = arith.constant 4 : i32
    %82 = tpu.dynamic_rotate %77 by %c4_i32_11 dim 2 : vector<2x8x32xf32>, i32 -> vector<2x8x32xf32>
    %cst_12 = arith.constant 0.000000e+00 : f32
    %83 = vector.shape_cast %22 : vector<1x1x32xi1> to vector<1x1x32xi1>
    %84 = vector.broadcast %83 : vector<1x1x32xi1> to vector<2x8x32xi1>
    %85 = vector.broadcast %cst_12 : f32 to vector<2x8x32xf32>
    %86 = arith.select %84, %82, %85 : vector<2x8x32xi1>, vector<2x8x32xf32>
    %87 = vector.extract_strided_slice %11 {offsets = [0, 4], sizes = [8, 1], strides = [1, 1]} : vector<8x6xf32> to vector<8x1xf32>
    %88 = vector.shape_cast %87 : vector<8x1xf32> to vector<1x8x1xf32>
    %89 = vector.broadcast %88 : vector<1x8x1xf32> to vector<2x8x32xf32>
    %90 = arith.mulf %89, %86 : vector<2x8x32xf32>
    %91 = arith.addf %81, %90 : vector<2x8x32xf32>
    %92 = vector.extract_strided_slice %12 {offsets = [0, 2], sizes = [8, 1], strides = [1, 1]} : vector<8x3xf32> to vector<8x1xf32>
    %93 = vector.shape_cast %92 : vector<8x1xf32> to vector<1x8x1xf32>
    %94 = vector.broadcast %93 : vector<1x8x1xf32> to vector<2x8x32xf32>
    %95 = arith.addf %91, %94 : vector<2x8x32xf32>
    %96 = arith.addf %95, %77 : vector<2x8x32xf32>
    %97 = vector.shape_cast %14 : vector<8x1xf32> to vector<1x8x1xf32>
    %98 = vector.broadcast %97 : vector<1x8x1xf32> to vector<2x8x32xf32>
    %99 = arith.mulf %98, %96 : vector<2x8x32xf32>
    %cst_13 = arith.constant dense<0.000000e+00> : vector<2x32xf32>
    %100 = vector.multi_reduction <add>, %99, %cst_13 [1] : vector<2x8x32xf32> to vector<2x32xf32>
    %101 = vector.broadcast %15 : vector<1x1xf32> to vector<2x32xf32>
    %102 = arith.addf %100, %101 : vector<2x32xf32>
    %c0_14 = arith.constant 0 : index
    %c0_15 = arith.constant 0 : index
    %103 = vector.load %arg3[%c0_14, %c0_15] : memref<2x32xf32, #tpu.memory_space<vmem>>, vector<2x32xf32>
    tpu.vector_store %arg3[%c0_14, %c0_15], %102 {strides = array<i32>} : memref<2x32xf32, #tpu.memory_space<vmem>>, vector<2x32xf32>,
    return
  }
  func.func @transform_0(%arg0: i32) -> (i32, i32, i32) {
    %c0_i32 = arith.constant 0 : i32
    %c0_i32_0 = arith.constant 0 : i32
    %c0_i32_1 = arith.constant 0 : i32
    return %arg0, %c0_i32, %c0_i32_0 : i32, i32, i32
  }
  func.func @transform_1(%arg0: i32) -> (i32, i32) {
    %c0_i32 = arith.constant 0 : i32
    %c0_i32_0 = arith.constant 0 : i32
    %c0_i32_1 = arith.constant 0 : i32
    return %c0_i32, %c0_i32_0 : i32, i32
  }
  func.func @transform_2(%arg0: i32) -> (i32, i32) {
    %c0_i32 = arith.constant 0 : i32
    %c0_i32_0 = arith.constant 0 : i32
    return %arg0, %c0_i32 : i32, i32
  }
}

</mosaic_0001>

<llo_original>
// kernel: tpu_custom_call.1
$region0: #{tpu_custom_call.1}
  #allocation0 [shape = 'u32[]', space=smem, size = 0x4, offset = 0x4, fixed_abs, tag = 'smem constant byte address 0x4 - core index']
  #allocation1 [shape = 'u32[72,128]{1,0:T(1,128)}', space=vmem, size = 0x9000, scoped, tag = 'internal scratch']
  %s0 = inlined_call_operand.hbm [shape: f32[2,8,32], index: 0, kind: input, shape index: {}]
  %s1 = inlined_call_operand.hbm [shape: f32[8,14], index: 1, kind: input, shape index: {}]
  %s2 = inlined_call_operand.hbm [shape: f32[2,32], index: 2, kind: output, shape index: {}]
  %s3 = sld [smem:[#allocation0]]
  $region26: #{tpu_custom_call.1} parent=0
    _
  %s5 = ssub.s32 1, %s3
  %s6 = scalar_select 0, %s5, %s3
  $region1: #{tpu_custom_call.1} parent=0
    #allocation2 [shape = 'u8[8192]{0}', space=vmem, size = 0x2000, scoped, tag = 'input window, operand 0, single buffered']
    #allocation3 [shape = 's32[1]{0}', space=sflag, size = 0x4, scoped, tag = 'scoped memory for tpu_custom_call.1']
    #allocation4 [shape = 's32[1]{0}', space=sflag, size = 0x4, scoped, tag = 'scoped memory for tpu_custom_call.1']
    #allocation5 [shape = 'u8[4096]{0}', space=vmem, size = 0x1000, scoped, tag = 'input window, operand 1, single buffered']
    #allocation6 [shape = 's32[1]{0}', space=sflag, size = 0x4, scoped, tag = 'scoped memory for tpu_custom_call.1']
    #allocation7 [shape = 'u8[1024]{0}', space=vmem, size = 0x400, scoped, tag = 'output window, operand 0, single buffered']
    %7 = vsyncpa [#allocation3], 0
    %8 = vsyncpa [#allocation6], 0
    %9 = vsyncpa [#allocation4], 0
    // Predicated region
    $region2: #{tpu_custom_call.1} parent=1 // pred_check
      _
    $region3: #{tpu_custom_call.1} parent=1 // pred_check_branch
      %11 = sbr.rel (0) target = $region5
    $region4: #{tpu_custom_call.1} parent=1 // pred_region
      %13 = vsyncadd [#allocation3], 0
      %s14 = sshll.u32 %s0, 4
      %s15 = int_to_ptr.hbm [resolvable:$true] %s14
      %s16 = sshll.u32 [#allocation2], 4
      %s17 = int_to_ptr.vmem [resolvable:$true] %s16
      %22 = dma.hbm_to_vmem [thread:$0]  %s15, 256, %s17, [#allocation3], 128, 128, 8
    $region5: #{tpu_custom_call.1} parent=1 // pred_fallthru
      _
    // Predicated region
    $region6: #{tpu_custom_call.1} parent=1 // pred_check
      _
    $region7: #{tpu_custom_call.1} parent=1 // pred_check_branch
      %24 = sbr.rel (0) target = $region9
    $region8: #{tpu_custom_call.1} parent=1 // pred_region
      %26 = vsyncadd [#allocation6], 0
      %s28 = sshll.u32 %s1, 4
      %s29 = int_to_ptr.hbm [resolvable:$true] %s28
      %s30 = sshll.u32 [#allocation5], 4
      %s31 = int_to_ptr.vmem [resolvable:$true] %s30
      %33 = dma.hbm_to_vmem [thread:$0]  %s29, 128, %s31, [#allocation6]
    $region9: #{tpu_custom_call.1} parent=1 // pred_fallthru
      _
    // Predicated region
    $region10: #{tpu_custom_call.1} parent=1 // pred_check
      _
    $region11: #{tpu_custom_call.1} parent=1 // pred_check_branch
      %35 = sbr.rel (0) target = $region13
    $region12: #{tpu_custom_call.1} parent=1 // pred_region
      %37 = dma.done [#allocation3], 256
    $region13: #{tpu_custom_call.1} parent=1 // pred_fallthru
      _
    // Predicated region
    $region14: #{tpu_custom_call.1} parent=1 // pred_check
      _
    $region15: #{tpu_custom_call.1} parent=1 // pred_check_branch
      %39 = sbr.rel (0) target = $region17
    $region16: #{tpu_custom_call.1} parent=1 // pred_region
      %41 = dma.done [#allocation6], 128
    $region17: #{tpu_custom_call.1} parent=1 // pred_fallthru
      _
    %v42 = vld [vmem:[#allocation5] sm:$0xff]
    %vm43 = vcmask 7168
    %v44 = vsel %vm43, %v42, -inf
    %v45 = vrot.slane %v44, 4
    %v46 = vmax.f32 %v44, %v45
    %v47 = vrot.slane %v46, 2
    %v48 = vmax.f32 %v46, %v47
    %v49 = vrot.slane %v48, 1
    %v50 = vmax.f32 %v48, %v49
    %v51 = vsub.f32 %v42, %v50
    %v52 = vmul.f32 %v51, 1.442695
    %v53 = vpow.pop %v52
    %v54 = vsel %vm43, %v53, 0.0
    %v55 = vrot.slane %v54, 4
    %v56 = vadd.f32 %v54, %v55
    %v57 = vrot.slane %v56, 2
    %v58 = vadd.f32 %v56, %v57
    %v59 = vrot.slane %v58, 1
    %v60 = vadd.f32 %v58, %v59
    %v61 = vrcp.pop %v60
    %v62 = vmul.f32 %v60, %v61
    %v63 = vsub.f32 1.0, %v62
    %v64 = vmul.f32 %v61, %v63
    %v65 = vadd.f32 %v61, %v64
    %vm66 = vweird.f32 %v60
    %vm67 = vweird.f32 %v61
    %vm68 = vmor %vm66, %vm67
    %v69 = vsel %vm68, %v61, %v65
    %v70 = vand.u32 2147483647, %v60
    %vm71 = vcmp.eq.f32.partialorder %v70, 8.507059e+37
    %v72 = vand.u32 %v60, 2147483648
    %v73 = vor.u32 1.1754944e-38, %v72
    %v74 = vsel %vm71, %v73, %v69
    %v75 = vmul.f32 %v53, %v74
    %v76 = vlaneseq
    %v77 = vand.u32 %v76, 127
    %vm78 = vcmp.ge.s32.totalorder %v77, 1
    %vm79 = vcmp.ge.s32.totalorder %v77, 2
    %vm80 = vcmp.ge.s32.totalorder %v77, 4
    %v81 = vld [vmem:[#allocation2] sm:$0xff]
    %v82 = vld [vmem:[#allocation2 + $0x8] sm:$0xff]
    %84 = vset.pattern.permute.xlu0 0
    %85 = vperm.xlu0 %84, %v75
    %v86 = vpop.permute.xlu0 %85
    %v88 = vmul.f32 %v81, %v86
    %v89 = vmul.f32 %v82, %v86
    %91 = vset.pattern.permute.xlu0 2
    %92 = vperm.xlu0 %91, %v42
    %v93 = vpop.permute.xlu0 %92
    %v95 = vmul.f32 %v93, %v88
    %v96 = vmul.f32 %v93, %v89
    %vm97 = vcmask 1047808
    %98 = vrot.lane.b32.xlu0 %v88, 32
    %v99 = vpop.permute.xlu0 %98
    %v100 = vsel %vm97, %v99, %v88
    %101 = vrot.lane.b32.xlu0 %v89, 32
    %v102 = vpop.permute.xlu0 %101
    %v103 = vsel %vm97, %v102, %v89
    %104 = vrot.lane.b32.xlu0 %v100, 32
    %v105 = vpop.permute.xlu0 %104
    %106 = vrot.lane.b32.xlu0 %v103, 32
    %v107 = vpop.permute.xlu0 %106
    %v108 = vsel %vm97, %v105, %v88
    %v109 = vsel %vm97, %v107, %v89
    %v110 = vsel %vm78, 1, 0
    %vm111 = vcmp.eq.s32.totalorder %v110, 1
    %114 = vrot.lane.b32.xlu0 %v108, 97
    %v115 = vpop.permute.xlu0 %114
    %116 = vrot.lane.b32.xlu0 %v109, 97
    %v117 = vpop.permute.xlu0 %116
    %v120 = vsel %vm111, %v115, 0.0
    %v121 = vsel %vm111, %v117, 0.0
    %122 = vset.pattern.permute.xlu0 1
    %123 = vperm.xlu0 %122, %v42
    %v124 = vpop.permute.xlu0 %123
    %v126 = vmul.f32 %v124, %v120
    %v127 = vmul.f32 %v124, %v121
    %v128 = vadd.f32 %v95, %v126
    %v129 = vadd.f32 %v96, %v127
    %130 = vset.pattern.permute.xlu0 7
    %131 = vperm.xlu0 %130, %v42
    %v132 = vpop.permute.xlu0 %131
    %v134 = vadd.f32 %v128, %v132
    %v135 = vadd.f32 %v129, %v132
    %vm136 = vcmp.gt.f32.partialorder %v134, 0.0
    %vm137 = vcmp.gt.f32.partialorder %v135, 0.0
    %138 = vset.pattern.permute.xlu0 10
    %139 = vperm.xlu0 %138, %v42
    %v140 = vpop.permute.xlu0 %139
    %v142 = vmul.f32 %v140, %v134
    %v143 = vmul.f32 %v140, %v135
    %v144 = vsel %vm136, %v134, %v142
    %v145 = vsel %vm137, %v135, %v143
    %146 = vset.pattern.permute.xlu0 4
    %147 = vperm.xlu0 %146, %v42
    %v148 = vpop.permute.xlu0 %147
    %v150 = vmul.f32 %v148, %v144
    %v151 = vmul.f32 %v148, %v145
    %152 = vrot.lane.b32.xlu0 %v144, 32
    %v153 = vpop.permute.xlu0 %152
    %v154 = vsel %vm97, %v153, %v144
    %155 = vrot.lane.b32.xlu0 %v145, 32
    %v156 = vpop.permute.xlu0 %155
    %v157 = vsel %vm97, %v156, %v145
    %158 = vrot.lane.b32.xlu0 %v154, 32
    %v159 = vpop.permute.xlu0 %158
    %160 = vrot.lane.b32.xlu0 %v157, 32
    %v161 = vpop.permute.xlu0 %160
    %v162 = vsel %vm97, %v159, %v144
    %v163 = vsel %vm97, %v161, %v145
    %v164 = vsel %vm79, 1, 0
    %vm165 = vcmp.eq.s32.totalorder %v164, 1
    %168 = vrot.lane.b32.xlu0 %v162, 98
    %v169 = vpop.permute.xlu0 %168
    %170 = vrot.lane.b32.xlu0 %v163, 98
    %v171 = vpop.permute.xlu0 %170
    %v174 = vsel %vm165, %v169, 0.0
    %v175 = vsel %vm165, %v171, 0.0
    %176 = vset.pattern.permute.xlu0 3
    %177 = vperm.xlu0 %176, %v42
    %v178 = vpop.permute.xlu0 %177
    %v180 = vmul.f32 %v178, %v174
    %v181 = vmul.f32 %v178, %v175
    %v182 = vadd.f32 %v150, %v180
    %v183 = vadd.f32 %v151, %v181
    %184 = vset.pattern.permute.xlu0 8
    %185 = vperm.xlu0 %184, %v42
    %v186 = vpop.permute.xlu0 %185
    %v188 = vadd.f32 %v182, %v186
    %v189 = vadd.f32 %v183, %v186
    %v190 = vadd.f32 %v188, %v144
    %v191 = vadd.f32 %v189, %v145
    %vm192 = vcmp.gt.f32.partialorder %v190, 0.0
    %vm193 = vcmp.gt.f32.partialorder %v191, 0.0
    %194 = vset.pattern.permute.xlu0 11
    %195 = vperm.xlu0 %194, %v42
    %v196 = vpop.permute.xlu0 %195
    %v198 = vmul.f32 %v196, %v190
    %v199 = vmul.f32 %v196, %v191
    %v200 = vsel %vm192, %v190, %v198
    %v201 = vsel %vm193, %v191, %v199
    %202 = vset.pattern.permute.xlu0 6
    %203 = vperm.xlu0 %202, %v42
    %v204 = vpop.permute.xlu0 %203
    %v206 = vmul.f32 %v204, %v200
    %v207 = vmul.f32 %v204, %v201
    %208 = vrot.lane.b32.xlu0 %v200, 32
    %v209 = vpop.permute.xlu0 %208
    %v210 = vsel %vm97, %v209, %v200
    %211 = vrot.lane.b32.xlu0 %v201, 32
    %v212 = vpop.permute.xlu0 %211
    %v213 = vsel %vm97, %v212, %v201
    %214 = vrot.lane.b32.xlu0 %v210, 32
    %v215 = vpop.permute.xlu0 %214
    %216 = vrot.lane.b32.xlu0 %v213, 32
    %v217 = vpop.permute.xlu0 %216
    %v218 = vsel %vm97, %v215, %v200
    %v219 = vsel %vm97, %v217, %v201
    %v220 = vsel %vm80, 1, 0
    %vm221 = vcmp.eq.s32.totalorder %v220, 1
    %224 = vrot.lane.b32.xlu0 %v218, 100
    %v225 = vpop.permute.xlu0 %224
    %226 = vrot.lane.b32.xlu0 %v219, 100
    %v227 = vpop.permute.xlu0 %226
    %v230 = vsel %vm221, %v225, 0.0
    %v231 = vsel %vm221, %v227, 0.0
    %232 = vset.pattern.permute.xlu0 5
    %233 = vperm.xlu0 %232, %v42
    %v234 = vpop.permute.xlu0 %233
    %v236 = vmul.f32 %v234, %v230
    %v237 = vmul.f32 %v234, %v231
    %v238 = vadd.f32 %v206, %v236
    %v239 = vadd.f32 %v207, %v237
    %240 = vset.pattern.permute.xlu0 9
    %241 = vperm.xlu0 %240, %v42
    %v242 = vpop.permute.xlu0 %241
    %v244 = vadd.f32 %v238, %v242
    %v245 = vadd.f32 %v239, %v242
    %v246 = vadd.f32 %v244, %v200
    %v247 = vadd.f32 %v245, %v201
    %248 = vset.pattern.permute.xlu0 12
    %249 = vperm.xlu0 %248, %v42
    %v250 = vpop.permute.xlu0 %249
    %v252 = vmul.f32 %v250, %v246
    %v253 = vmul.f32 %v250, %v247
    %vm254 = vcmask 261120
    %v255 = vsel %vm254, %v252, 0.0
    %v256 = vrot.slane %v255, 4
    %v257 = vadd.f32 %v255, %v256
    %v258 = vrot.slane %v257, 2
    %v259 = vadd.f32 %v257, %v258
    %v260 = vrot.slane %v259, 1
    %v261 = vadd.f32 %v259, %v260
    %v262 = vsel %vm254, %v253, 0.0
    %v263 = vrot.slane %v262, 4
    %v264 = vadd.f32 %v262, %v263
    %v265 = vrot.slane %v264, 2
    %v266 = vadd.f32 %v264, %v265
    %v267 = vrot.slane %v266, 1
    %v268 = vadd.f32 %v266, %v267
    %269 = vrot.lane.b32.xlu0 %v42, 115
    %v270 = vpop.permute.xlu0 %269
    %s271 = vtos %v270
    %v272 = vstv %s271
    %v274 = vadd.f32 %v261, %v272
    %v275 = vadd.f32 %v268, %v272
    %vm278 = vcmask 1041409
    %v279 = vsel %vm278, %v275, %v274
    %vm281 = vcmask 254976
    %282 = vst.msk [vmem:[#allocation7] sm:$0x3] %vm281, %v279
    // Predicated region
    $region18: #{tpu_custom_call.1} parent=1 // pred_check
      _
    $region19: #{tpu_custom_call.1} parent=1 // pred_check_branch
      %284 = sbr.rel (0) target = $region21
    $region20: #{tpu_custom_call.1} parent=1 // pred_region
      %286 = vsyncadd [#allocation4], 0
      %s288 = sshll.u32 [#allocation7], 4
      %s289 = int_to_ptr.vmem [resolvable:$true] %s288
      %s290 = sshll.u32 %s2, 4
      %s291 = int_to_ptr.hbm [resolvable:$true] %s290
      %293 = dma.vmem_to_hbm [thread:$0]  %s289, 32, %s291, [#allocation4]
    $region21: #{tpu_custom_call.1} parent=1 // pred_fallthru
      _
    // Predicated region
    $region22: #{tpu_custom_call.1} parent=1 // pred_check
      _
    $region23: #{tpu_custom_call.1} parent=1 // pred_check_branch
      %295 = sbr.rel (0) target = $region25
    $region24: #{tpu_custom_call.1} parent=1 // pred_region
      %297 = dma.done [#allocation4], 32
    $region25: #{tpu_custom_call.1} parent=1 // pred_fallthru
      _
    %298 = vsyncpa [#allocation3], 1
    %299 = vsyncpa [#allocation6], 1
    %300 = vsyncpa [#allocation4], 1

</llo_original>
